<compile_context>
chip_gen: v6e
topology: v6e:2x2x1
jax: 0.10.0
libtpu: 0.0.40
codegen_flags: <defaults>
</compile_context>

<pallas_src>
import functools
import math

import jax
import jax.numpy as jnp
from jax.experimental import pallas as pl
from jax.experimental.pallas import tpu as pltpu

_LANE = 128      # lane width (last dim)
_SUBLANE = 8     # f32 sublane count (second-to-last dim)
_ROW_TILE = 256  # batch tile for the gridded (large-batch) path


def _round_up(n, m):
    return ((n + m - 1) // m) * m


def _fused_mlp_kernel(*refs, relu_flags):
    """refs = (x, w0, b0, w1, b1, ..., out). The whole chain stays on-chip."""
    x_ref = refs[0]
    o_ref = refs[-1]
    wb = refs[1:-1]
    h = x_ref[...]
    for li, relu in enumerate(relu_flags):
        w = wb[2 * li][...]
        b = wb[2 * li + 1][...]
        h = jnp.dot(h, w, preferred_element_type=jnp.float32) + b
        if relu:
            h = jnp.maximum(h, 0.0)
    o_ref[...] = h.astype(o_ref.dtype)


def fused_mlp(x_pad, weights, biases, relu_flags, out_dtype):
    """Run a padded Linear(+ReLU) chain as one fused Pallas kernel.

    weights[i]: (Din_pad_i, Dout_pad_i) == torch weight.T zero-padded to lane
    multiples; biases[i]: (1, Dout_pad_i).
    """
    B_pad, Din_pad = x_pad.shape
    Dout_pad = weights[-1].shape[1]
    kernel = functools.partial(_fused_mlp_kernel, relu_flags=relu_flags)

    args = [x_pad]
    for w, b in zip(weights, biases):
        args.extend((w, b))
    out_shape = jax.ShapeDtypeStruct((B_pad, Dout_pad), out_dtype)

    if B_pad <= _ROW_TILE:
        # Small batch: everything fits comfortably in VMEM -> gridless call,
        # single kernel launch, full-array VMEM-resident operands.
        return pl.pallas_call(kernel, out_shape=out_shape)(*args)

    # Large batch: tile rows. Weights/bias use a constant block index, so they
    # are fetched once and stay resident; the row axis is "parallel" so v7x's
    # two TensorCores split the work (no effect on v5e/v6e).
    assert B_pad % _ROW_TILE == 0
    in_specs = [pl.BlockSpec((_ROW_TILE, Din_pad), lambda i: (i, 0))]
    for w, b in zip(weights, biases):
        din, dout = w.shape
        in_specs.append(pl.BlockSpec((din, dout), lambda i: (0, 0)))
        in_specs.append(pl.BlockSpec((1, dout), lambda i: (0, 0)))
    return pl.pallas_call(
        kernel,
        out_shape=out_shape,
        grid=(B_pad // _ROW_TILE,),
        in_specs=in_specs,
        out_specs=pl.BlockSpec((_ROW_TILE, Dout_pad), lambda i: (i, 0)),
        compiler_params=pltpu.CompilerParams(
            dimension_semantics=("parallel",),
        ),
    )(*args)


@functools.partial(jax.jit, static_argnames=("relu_flags", "n_rows", "n_cols"))
def _padded_forward(x2d, weights, biases, relu_flags, n_rows, n_cols):
    """Pad -> fused Pallas MLP -> slice, all inside one jit for fusion/caching."""
    B, Din = x2d.shape
    Din_pad = weights[0].shape[0]
    B_pad = _round_up(max(B, _SUBLANE), _SUBLANE)
    if B_pad > _ROW_TILE:
        B_pad = _round_up(B_pad, _ROW_TILE)
    h_pad = jnp.zeros((B_pad, Din_pad), x2d.dtype).at[:B, :Din].set(x2d)
    out_pad = fused_mlp(h_pad, weights, biases, relu_flags, x2d.dtype)
    return out_pad[:n_rows, :n_cols]


def init_linear_params(key, fan_in, fan_out, dtype=jnp.float32):
    """Matches torch.nn.Linear init: U(-1/sqrt(fan_in), 1/sqrt(fan_in))."""
    kw, kb = jax.random.split(key)
    bound = 1.0 / math.sqrt(fan_in)
    # stored as (in, out) == torch weight.T
    w = jax.random.uniform(kw, (fan_in, fan_out), dtype, -bound, bound)
    b = jax.random.uniform(kb, (1, fan_out), dtype, -bound, bound)
    return w, b


def _pad_layer(w, b):
    """Zero-pad weight/bias feature dims up to lane multiples (exact math)."""
    fan_in, fan_out = w.shape
    wp = jnp.zeros((_round_up(fan_in, _LANE), _round_up(fan_out, _LANE)), w.dtype)
    wp = wp.at[:fan_in, :fan_out].set(w)
    bp = jnp.zeros((1, _round_up(fan_out, _LANE)), b.dtype)
    bp = bp.at[:, :fan_out].set(b)
    return wp, bp


class AEPallas:
    """JAX/Pallas port of solo.emb_methods.autoencoder.AE (fused forward)."""

    def __init__(self, input_size, sizes, key, dtype=jnp.float32):
        layer_sizes = [input_size] + list(sizes)
        self.is_train = False
        self.input_size = input_size
        self.latent_size = layer_sizes[-1]

        n_enc = len(layer_sizes) - 1
        keys = jax.random.split(key, 2 * n_enc)

        # encoder: Linear+ReLU stack, last ReLU dropped
        enc_w, enc_b, enc_relu, enc_dims = [], [], [], []
        for idx in range(1, len(layer_sizes)):
            fan_in, fan_out = layer_sizes[idx - 1], layer_sizes[idx]
            w, b = init_linear_params(keys[idx - 1], fan_in, fan_out, dtype)
            wp, bp = _pad_layer(w, b)
            enc_w.append(wp)
            enc_b.append(bp)
            enc_relu.append(idx != len(layer_sizes) - 1)
            enc_dims.append((fan_in, fan_out))
        self.enc_w, self.enc_b = tuple(enc_w), tuple(enc_b)
        self.enc_relu, self.enc_dims = tuple(enc_relu), tuple(enc_dims)

        # decoder: reversed Linear+ReLU stack, last ReLU dropped
        dec_w, dec_b, dec_relu, dec_dims = [], [], [], []
        ki = n_enc
        for idx in range(len(layer_sizes) - 1, 0, -1):
            fan_in, fan_out = layer_sizes[idx], layer_sizes[idx - 1]
            w, b = init_linear_params(keys[ki], fan_in, fan_out, dtype)
            ki += 1
            wp, bp = _pad_layer(w, b)
            dec_w.append(wp)
            dec_b.append(bp)
            dec_relu.append(idx != 1)
            dec_dims.append((fan_in, fan_out))
        self.dec_w, self.dec_b = tuple(dec_w), tuple(dec_b)
        self.dec_relu, self.dec_dims = tuple(dec_relu), tuple(dec_dims)

    def train(self):
        self.is_train = True

    def eval(self):
        self.is_train = False

    def __call__(self, x):
        x_shape = x.shape
        B = x_shape[0]
        h = x.reshape(B, -1)            # identical to torch x.reshape(B, -1)

        if self.is_train:
            weights = self.enc_w + self.dec_w
            biases = self.enc_b + self.dec_b
            relu_flags = self.enc_relu + self.dec_relu
            out = _padded_forward(h, weights, biases,
                                  relu_flags=relu_flags,
                                  n_rows=B, n_cols=self.input_size)
            return out.reshape(x_shape)

        out = _padded_forward(h, self.enc_w, self.enc_b,
                              relu_flags=self.enc_relu,
                              n_rows=B, n_cols=self.latent_size)
        return out


def _reference_forward(model, x):
    """Pure-JAX reference of the same forward pass (uses unpadded slices)."""
    h = x.reshape(x.shape[0], -1)
    if model.is_train:
        ws = model.enc_w + model.dec_w
        bs = model.enc_b + model.dec_b
        relus = model.enc_relu + model.dec_relu
        dims = model.enc_dims + model.dec_dims
    else:
        ws, bs, relus, dims = model.enc_w, model.enc_b, model.enc_relu, model.enc_dims
    for w, b, relu, (fi, fo) in zip(ws, bs, relus, dims):
        h = h @ w[:fi, :fo] + b[:, :fo]
        if relu:
            h = jnp.maximum(h, 0.0)
    if model.is_train:
        return h.reshape(x.shape)
    return h


if __name__ == "__main__":
    key = jax.random.PRNGKey(0)
    k_x, k_params = jax.random.split(key)

    # cfg.emb_model.input_size = C*H*W = 64, cfg.emb_model.sizes = [32, 16]
    B, C, H, W = 2, 4, 4, 4
    input_size = C * H * W
    sizes = [32, 16]

    x = jax.random.normal(k_x, (B, C, H, W), dtype=jnp.float32)
    model = AEPallas(input_size, sizes, k_params)

    # eval path (default): returns latent (B, 16)
    model.eval()
    latent = jax.block_until_ready(model(x))
    assert latent.shape == (B, sizes[-1])
    ref_latent = _reference_forward(model, x)
    assert jnp.allclose(latent, ref_latent, atol=1e-5, rtol=1e-5)

    # train path: returns reconstruction with the original NCHW shape
    model.train()
    x_pred = jax.block_until_ready(model(x))
    assert x_pred.shape == x.shape
    ref_pred = _reference_forward(model, x)
    assert jnp.allclose(x_pred, ref_pred, atol=1e-5, rtol=1e-5)

    print("KERNEL_OK")
</pallas_src>

<mosaic_0001>
module attributes {stable_mosaic.version = 11 : i64} {
  func.func @_fused_mlp_kernel(%arg0: memref<8x128xf32, #tpu.memory_space<vmem>>, %arg1: memref<128x128xf32, #tpu.memory_space<vmem>>, %arg2: memref<1x128xf32, #tpu.memory_space<vmem>>, %arg3: memref<128x128xf32, #tpu.memory_space<vmem>>, %arg4: memref<1x128xf32, #tpu.memory_space<vmem>>, %arg5: memref<8x128xf32, #tpu.memory_space<vmem>>) attributes {dimension_semantics = [], scalar_prefetch = 0 : i64, scratch_operands = 0 : i64, tpu.core_type = #tpu.core_type<tc>} {
    %c0 = arith.constant 0 : index
    %c0_0 = arith.constant 0 : index
    %0 = vector.load %arg0[%c0, %c0_0] : memref<8x128xf32, #tpu.memory_space<vmem>>, vector<8x128xf32>
    %c0_1 = arith.constant 0 : index
    %c0_2 = arith.constant 0 : index
    %1 = vector.load %arg1[%c0_1, %c0_2] : memref<128x128xf32, #tpu.memory_space<vmem>>, vector<128x128xf32>
    %c0_3 = arith.constant 0 : index
    %c0_4 = arith.constant 0 : index
    %2 = vector.load %arg2[%c0_3, %c0_4] : memref<1x128xf32, #tpu.memory_space<vmem>>, vector<1x128xf32>
    %cst = arith.constant dense<0.000000e+00> : vector<8x128xf32>
    %3 = tpu.matmul %0, %1, %cst {dimension_numbers = #tpu.dot_dimension_numbers<[1], [0], [0], [1], [0, 0, 1, 1], [], []>} : vector<8x128xf32>, vector<128x128xf32>, vector<8x128xf32> -> vector<8x128xf32>
    %4 = vector.broadcast %2 : vector<1x128xf32> to vector<8x128xf32>
    %5 = arith.addf %3, %4 : vector<8x128xf32>
    %cst_5 = arith.constant 0.000000e+00 : f32
    %6 = vector.broadcast %cst_5 : f32 to vector<8x128xf32>
    %7 = arith.maximumf %5, %6 : vector<8x128xf32>
    %c0_6 = arith.constant 0 : index
    %c0_7 = arith.constant 0 : index
    %8 = vector.load %arg3[%c0_6, %c0_7] : memref<128x128xf32, #tpu.memory_space<vmem>>, vector<128x128xf32>
    %c0_8 = arith.constant 0 : index
    %c0_9 = arith.constant 0 : index
    %9 = vector.load %arg4[%c0_8, %c0_9] : memref<1x128xf32, #tpu.memory_space<vmem>>, vector<1x128xf32>
    %cst_10 = arith.constant dense<0.000000e+00> : vector<8x128xf32>
    %10 = tpu.matmul %7, %8, %cst_10 {dimension_numbers = #tpu.dot_dimension_numbers<[1], [0], [0], [1], [0, 0, 1, 1], [], []>} : vector<8x128xf32>, vector<128x128xf32>, vector<8x128xf32> -> vector<8x128xf32>
    %11 = vector.broadcast %9 : vector<1x128xf32> to vector<8x128xf32>
    %12 = arith.addf %10, %11 : vector<8x128xf32>
    %c0_11 = arith.constant 0 : index
    %c0_12 = arith.constant 0 : index
    %13 = vector.load %arg5[%c0_11, %c0_12] : memref<8x128xf32, #tpu.memory_space<vmem>>, vector<8x128xf32>
    tpu.vector_store %arg5[%c0_11, %c0_12], %12 {strides = array<i32>} : memref<8x128xf32, #tpu.memory_space<vmem>>, vector<8x128xf32>,
    return
  }
}

</mosaic_0001>

<llo_original>
// kernel: _padded_forward.1
$region0: #{_padded_forward.1}
  #allocation0 [shape = 'u32[]', space=smem, size = 0x4, offset = 0x4, fixed_abs, tag = 'smem constant byte address 0x4 - core index']
  #allocation1 [shape = 'u32[144,128]{1,0:T(1,128)}', space=vmem, size = 0x12000, scoped, tag = 'internal scratch']
  %s0 = inlined_call_operand.vmem [shape: f32[8,128], index: 0, kind: input, shape index: {}]
  %s1 = inlined_call_operand.hbm [shape: f32[128,128], index: 1, kind: input, shape index: {}]
  %s2 = inlined_call_operand.vmem [shape: f32[1,128], index: 2, kind: input, shape index: {}]
  %s3 = inlined_call_operand.hbm [shape: f32[128,128], index: 3, kind: input, shape index: {}]
  %s4 = inlined_call_operand.vmem [shape: f32[1,128], index: 4, kind: input, shape index: {}]
  %s5 = inlined_call_operand.vmem [shape: f32[8,128], index: 5, kind: output, shape index: {}]
  %s6 = sld [smem:[#allocation0]]
  $region38: #{_padded_forward.1} parent=0
    _
  %s8 = ssub.s32 1, %s6
  %s9 = scalar_select 0, %s8, %s6
  $region1: #{_padded_forward.1} parent=0
    #allocation2 [shape = 'u8[65536]{0}', space=vmem, size = 0x10000, scoped, tag = 'input window, operand 1, single buffered']
    #allocation3 [shape = 's32[1]{0}', space=sflag, size = 0x4, scoped, tag = 'scoped memory for _padded_forward.1']
    #allocation4 [shape = 'u8[65536]{0}', space=vmem, size = 0x10000, scoped, tag = 'input window, operand 3, single buffered']
    #allocation5 [shape = 's32[1]{0}', space=sflag, size = 0x4, scoped, tag = 'scoped memory for _padded_forward.1']
    %10 = vsyncpa [#allocation3], 0
    %11 = vsyncpa [#allocation5], 0
    // Predicated region
    $region2: #{_padded_forward.1} parent=1 // pred_check
      _
    $region3: #{_padded_forward.1} parent=1 // pred_check_branch
      %13 = sbr.rel (0) target = $region5
    $region4: #{_padded_forward.1} parent=1 // pred_region
      _
    $region5: #{_padded_forward.1} parent=1 // pred_fallthru
      _
    // Predicated region
    $region6: #{_padded_forward.1} parent=1 // pred_check
      _
    $region7: #{_padded_forward.1} parent=1 // pred_check_branch
      %15 = sbr.rel (0) target = $region9
    $region8: #{_padded_forward.1} parent=1 // pred_region
      %s17 = ssub.s32 2048, 2048
      %18 = vsyncadd [#allocation3], %s17
      %s19 = sshll.u32 [#allocation2], 4
      %s20 = int_to_ptr.vmem [resolvable:$true] %s19
      %25 = dma.hbm_to_vmem [thread:$0]  %s1, 2048, %s20, [#allocation3], 128, 128, 8
    $region9: #{_padded_forward.1} parent=1 // pred_fallthru
      _
    // Predicated region
    $region10: #{_padded_forward.1} parent=1 // pred_check
      _
    $region11: #{_padded_forward.1} parent=1 // pred_check_branch
      %27 = sbr.rel (0) target = $region13
    $region12: #{_padded_forward.1} parent=1 // pred_region
      _
    $region13: #{_padded_forward.1} parent=1 // pred_fallthru
      _
    // Predicated region
    $region14: #{_padded_forward.1} parent=1 // pred_check
      _
    $region15: #{_padded_forward.1} parent=1 // pred_check_branch
      %29 = sbr.rel (0) target = $region17
    $region16: #{_padded_forward.1} parent=1 // pred_region
      %s31 = ssub.s32 2048, 2048
      %32 = vsyncadd [#allocation5], %s31
      %s33 = sshll.u32 [#allocation4], 4
      %s34 = int_to_ptr.vmem [resolvable:$true] %s33
      %39 = dma.hbm_to_vmem [thread:$0]  %s3, 2048, %s34, [#allocation5], 128, 128, 8
    $region17: #{_padded_forward.1} parent=1 // pred_fallthru
      _
    // Predicated region
    $region18: #{_padded_forward.1} parent=1 // pred_check
      _
    $region19: #{_padded_forward.1} parent=1 // pred_check_branch
      %41 = sbr.rel (0) target = $region21
    $region20: #{_padded_forward.1} parent=1 // pred_region
      _
    $region21: #{_padded_forward.1} parent=1 // pred_fallthru
      _
    // Predicated region
    $region22: #{_padded_forward.1} parent=1 // pred_check
      _
    $region23: #{_padded_forward.1} parent=1 // pred_check_branch
      %43 = sbr.rel (0) target = $region25
    $region24: #{_padded_forward.1} parent=1 // pred_region
      %44 = dma.done [#allocation3], 2048
    $region25: #{_padded_forward.1} parent=1 // pred_fallthru
      _
    // Predicated region
    $region26: #{_padded_forward.1} parent=1 // pred_check
      _
    $region27: #{_padded_forward.1} parent=1 // pred_check_branch
      %46 = sbr.rel (0) target = $region29
    $region28: #{_padded_forward.1} parent=1 // pred_region
      %47 = dma.done [#allocation5], 2048
    $region29: #{_padded_forward.1} parent=1 // pred_fallthru
      _
    %v48 = vld [vmem:[%s0] sm:$0xff]
    %v49 = vld [vmem:[#allocation2] sm:$0xff]
    %v50 = vld [vmem:[#allocation2 + $0x8] sm:$0xff]
    %v51 = vld [vmem:[#allocation2 + $0x10] sm:$0xff]
    %v52 = vld [vmem:[#allocation2 + $0x18] sm:$0xff]
    %v53 = vld [vmem:[#allocation2 + $0x20] sm:$0xff]
    %v54 = vld [vmem:[#allocation2 + $0x28] sm:$0xff]
    %v55 = vld [vmem:[#allocation2 + $0x30] sm:$0xff]
    %v56 = vld [vmem:[#allocation2 + $0x38] sm:$0xff]
    %v57 = vld [vmem:[#allocation2 + $0x40] sm:$0xff]
    %v58 = vld [vmem:[#allocation2 + $0x48] sm:$0xff]
    %v59 = vld [vmem:[#allocation2 + $0x50] sm:$0xff]
    %v60 = vld [vmem:[#allocation2 + $0x58] sm:$0xff]
    %v61 = vld [vmem:[#allocation2 + $0x60] sm:$0xff]
    %v62 = vld [vmem:[#allocation2 + $0x68] sm:$0xff]
    %v63 = vld [vmem:[#allocation2 + $0x70] sm:$0xff]
    %v64 = vld [vmem:[#allocation2 + $0x78] sm:$0xff]
    %v65 = vld [vmem:[%s2] sm:$0x1]
    %v67 = vlaneseq
    %v68 = vshrl.u32 %v67, 7
    %v69 = vsub.s32 0, %v68
    %v70 = vrot.slane %v65, %v69
    %72 = vmatprep.subr.mxu0 0.0
    %73 = vmatpush1.msra.mxu0 %v64
    %74 = vmatprep.subr.mxu0 0.0
    %75 = vmatpush1.msra.mxu0 %v63
    %76 = vmatprep.subr.mxu0 0.0
    %77 = vmatpush1.msra.mxu0 %v62
    %78 = vmatprep.subr.mxu0 0.0
    %79 = vmatpush1.msra.mxu0 %v61
    %80 = vmatprep.subr.mxu0 0.0
    %81 = vmatpush1.msra.mxu0 %v60
    %82 = vmatprep.subr.mxu0 0.0
    %83 = vmatpush1.msra.mxu0 %v59
    %84 = vmatprep.subr.mxu0 0.0
    %85 = vmatpush1.msra.mxu0 %v58
    %86 = vmatprep.subr.mxu0 0.0
    %87 = vmatpush1.msra.mxu0 %v57
    %88 = vmatprep.subr.mxu0 0.0
    %89 = vmatpush1.msra.mxu0 %v56
    %90 = vmatprep.subr.mxu0 0.0
    %91 = vmatpush1.msra.mxu0 %v55
    %92 = vmatprep.subr.mxu0 0.0
    %93 = vmatpush1.msra.mxu0 %v54
    %94 = vmatprep.subr.mxu0 0.0
    %95 = vmatpush1.msra.mxu0 %v53
    %96 = vmatprep.subr.mxu0 0.0
    %97 = vmatpush1.msra.mxu0 %v52
    %98 = vmatprep.subr.mxu0 0.0
    %99 = vmatpush1.msra.mxu0 %v51
    %100 = vmatprep.subr.mxu0 0.0
    %101 = vmatpush1.msra.mxu0 %v50
    %102 = vmatprep.subr.mxu0 0.0
    %103 = vmatpush1.msra.mxu0 %v49
    %104 = vmatprep.subr.mxu0 0.0
    %105 = vmatpush2.msra.mxu0 0.0
    %106 = vmatprep.subr.mxu0 0.0
    %107 = vmatpush2.msra.mxu0 0.0
    %108 = vmatprep.subr.mxu0 0.0
    %109 = vmatpush2.msra.mxu0 0.0
    %110 = vmatprep.subr.mxu0 0.0
    %111 = vmatpush2.msra.mxu0 0.0
    %112 = vmatprep.subr.mxu0 0.0
    %113 = vmatpush2.msra.mxu0 0.0
    %114 = vmatprep.subr.mxu0 0.0
    %115 = vmatpush2.msra.mxu0 0.0
    %116 = vmatprep.subr.mxu0 0.0
    %117 = vmatpush2.msra.mxu0 0.0
    %118 = vmatprep.subr.mxu0 0.0
    %119 = vmatpush2.msra.mxu0 0.0
    %120 = vmatprep.subr.mxu0 0.0
    %121 = vmatpush2.msra.mxu0 0.0
    %122 = vmatprep.subr.mxu0 0.0
    %123 = vmatpush2.msra.mxu0 0.0
    %124 = vmatprep.subr.mxu0 0.0
    %125 = vmatpush2.msra.mxu0 0.0
    %126 = vmatprep.subr.mxu0 0.0
    %127 = vmatpush2.msra.mxu0 0.0
    %128 = vmatprep.subr.mxu0 0.0
    %129 = vmatpush2.msra.mxu0 0.0
    %130 = vmatprep.subr.mxu0 0.0
    %131 = vmatpush2.msra.mxu0 0.0
    %132 = vmatprep.subr.mxu0 0.0
    %133 = vmatpush2.msra.mxu0 0.0
    %134 = vmatprep.subr.mxu0 0.0
    %135 = vmatpush2.msra.mxu0 0.0
    %136 = vmatprep.mubr.f32.mxu0 0.0
    %137 = vmatmul.mubr.f32.gmra.mxu0 %v48
    %v138 = vpop.f32.mrf.mxu0
    %v139 = vadd.f32 %v70, %v138
    %v140 = vpop.f32.mrf.mxu0
    %141 = vdwg.mxu0
    %v142 = vmax.f32 %v139, 0.0
    %v143 = vld [vmem:[#allocation4] sm:$0xff]
    %v144 = vld [vmem:[#allocation4 + $0x8] sm:$0xff]
    %v145 = vld [vmem:[#allocation4 + $0x10] sm:$0xff]
    %v146 = vld [vmem:[#allocation4 + $0x18] sm:$0xff]
    %v147 = vld [vmem:[#allocation4 + $0x20] sm:$0xff]
    %v148 = vld [vmem:[#allocation4 + $0x28] sm:$0xff]
    %v149 = vld [vmem:[#allocation4 + $0x30] sm:$0xff]
    %v150 = vld [vmem:[#allocation4 + $0x38] sm:$0xff]
    %v151 = vld [vmem:[#allocation4 + $0x40] sm:$0xff]
    %v152 = vld [vmem:[#allocation4 + $0x48] sm:$0xff]
    %v153 = vld [vmem:[#allocation4 + $0x50] sm:$0xff]
    %v154 = vld [vmem:[#allocation4 + $0x58] sm:$0xff]
    %v155 = vld [vmem:[#allocation4 + $0x60] sm:$0xff]
    %v156 = vld [vmem:[#allocation4 + $0x68] sm:$0xff]
    %v157 = vld [vmem:[#allocation4 + $0x70] sm:$0xff]
    %v158 = vld [vmem:[#allocation4 + $0x78] sm:$0xff]
    %v159 = vld [vmem:[%s4] sm:$0x1]
    %v161 = vlaneseq
    %v162 = vshrl.u32 %v161, 7
    %v163 = vsub.s32 0, %v162
    %v164 = vrot.slane %v159, %v163
    %166 = vmatprep.subr.mxu0 0.0
    %167 = vmatpush1.msra.mxu0 %v158
    %168 = vmatprep.subr.mxu0 0.0
    %169 = vmatpush1.msra.mxu0 %v157
    %170 = vmatprep.subr.mxu0 0.0
    %171 = vmatpush1.msra.mxu0 %v156
    %172 = vmatprep.subr.mxu0 0.0
    %173 = vmatpush1.msra.mxu0 %v155
    %174 = vmatprep.subr.mxu0 0.0
    %175 = vmatpush1.msra.mxu0 %v154
    %176 = vmatprep.subr.mxu0 0.0
    %177 = vmatpush1.msra.mxu0 %v153
    %178 = vmatprep.subr.mxu0 0.0
    %179 = vmatpush1.msra.mxu0 %v152
    %180 = vmatprep.subr.mxu0 0.0
    %181 = vmatpush1.msra.mxu0 %v151
    %182 = vmatprep.subr.mxu0 0.0
    %183 = vmatpush1.msra.mxu0 %v150
    %184 = vmatprep.subr.mxu0 0.0
    %185 = vmatpush1.msra.mxu0 %v149
    %186 = vmatprep.subr.mxu0 0.0
    %187 = vmatpush1.msra.mxu0 %v148
    %188 = vmatprep.subr.mxu0 0.0
    %189 = vmatpush1.msra.mxu0 %v147
    %190 = vmatprep.subr.mxu0 0.0
    %191 = vmatpush1.msra.mxu0 %v146
    %192 = vmatprep.subr.mxu0 0.0
    %193 = vmatpush1.msra.mxu0 %v145
    %194 = vmatprep.subr.mxu0 0.0
    %195 = vmatpush1.msra.mxu0 %v144
    %196 = vmatprep.subr.mxu0 0.0
    %197 = vmatpush1.msra.mxu0 %v143
    %198 = vmatprep.subr.mxu0 0.0
    %199 = vmatpush2.msra.mxu0 0.0
    %200 = vmatprep.subr.mxu0 0.0
    %201 = vmatpush2.msra.mxu0 0.0
    %202 = vmatprep.subr.mxu0 0.0
    %203 = vmatpush2.msra.mxu0 0.0
    %204 = vmatprep.subr.mxu0 0.0
    %205 = vmatpush2.msra.mxu0 0.0
    %206 = vmatprep.subr.mxu0 0.0
    %207 = vmatpush2.msra.mxu0 0.0
    %208 = vmatprep.subr.mxu0 0.0
    %209 = vmatpush2.msra.mxu0 0.0
    %210 = vmatprep.subr.mxu0 0.0
    %211 = vmatpush2.msra.mxu0 0.0
    %212 = vmatprep.subr.mxu0 0.0
    %213 = vmatpush2.msra.mxu0 0.0
    %214 = vmatprep.subr.mxu0 0.0
    %215 = vmatpush2.msra.mxu0 0.0
    %216 = vmatprep.subr.mxu0 0.0
    %217 = vmatpush2.msra.mxu0 0.0
    %218 = vmatprep.subr.mxu0 0.0
    %219 = vmatpush2.msra.mxu0 0.0
    %220 = vmatprep.subr.mxu0 0.0
    %221 = vmatpush2.msra.mxu0 0.0
    %222 = vmatprep.subr.mxu0 0.0
    %223 = vmatpush2.msra.mxu0 0.0
    %224 = vmatprep.subr.mxu0 0.0
    %225 = vmatpush2.msra.mxu0 0.0
    %226 = vmatprep.subr.mxu0 0.0
    %227 = vmatpush2.msra.mxu0 0.0
    %228 = vmatprep.subr.mxu0 0.0
    %229 = vmatpush2.msra.mxu0 0.0
    %230 = vmatprep.mubr.f32.mxu0 0.0
    %231 = vmatmul.mubr.f32.gmra.mxu0 %v142
    %v232 = vpop.f32.mrf.mxu0
    %v233 = vadd.f32 %v164, %v232
    %v234 = vpop.f32.mrf.mxu0
    %235 = vdwg.mxu0
    %236 = vst [vmem:[%s5] sm:$0xff] %v233
    // Predicated region
    $region30: #{_padded_forward.1} parent=1 // pred_check
      _
    $region31: #{_padded_forward.1} parent=1 // pred_check_branch
      %238 = sbr.rel (0) target = $region33
    $region32: #{_padded_forward.1} parent=1 // pred_region
      _
    $region33: #{_padded_forward.1} parent=1 // pred_fallthru
      _
    // Predicated region
    $region34: #{_padded_forward.1} parent=1 // pred_check
      _
    $region35: #{_padded_forward.1} parent=1 // pred_check_branch
      %240 = sbr.rel (0) target = $region37
    $region36: #{_padded_forward.1} parent=1 // pred_region
      _
    $region37: #{_padded_forward.1} parent=1 // pred_fallthru
      _
    %241 = vsyncpa [#allocation3], 1
    %242 = vsyncpa [#allocation5], 1

</llo_original>
